<compile_context>
chip_gen: v6e
topology: v6e:2x2x1
jax: 0.10.0
libtpu: 0.0.40
codegen_flags: <defaults>
</compile_context>

<pallas_src>
import functools
import math

import jax
import jax.numpy as jnp
from jax.experimental import pallas as pl
from jax.experimental.pallas import tpu as pltpu


_VMEM_LIMIT_BYTES = 64 * 1024 * 1024  # explicit scoped-VMEM budget (perf review)


def _cparams(dimension_semantics):
    return pltpu.CompilerParams(dimension_semantics=dimension_semantics,
                                vmem_limit_bytes=_VMEM_LIMIT_BYTES)


def _row_tile(m, max_tile=512):
    """Row tile for the folded (batch*seq) axis. Mem-bound epilogues want big
    tiles (~512 rows); grids use pl.cdiv so awkward M gets a padded last block
    instead of one giant unpipelined block."""
    return m if m <= max_tile else max_tile


def _col_tile(f, max_tile=1024):
    """Tile for the FFN hidden dim so w1/w2 blocks stay within the VMEM budget."""
    if f <= max_tile:
        return f
    for t in range(max_tile, 127, -128):
        if f % t == 0:
            return t
    return f  # TODO(synk): pad dff when it has no multiple-of-128 divisor.


# ---------------------------------------------------------------------------
# Fused, head-split projections:  out_h = x @ W_h + b_h   for several (W, b)
# sharing one x row tile.  Weights are stored head-split: (H, in_dim, Dh).
# ---------------------------------------------------------------------------
def _head_proj_kernel(x_ref, *refs, nproj):
    # refs = (w_0, b_0, ..., w_{n-1}, b_{n-1}, out_0, ..., out_{n-1})
    x = x_ref[...]
    for j in range(nproj):
        w = refs[2 * j][...]                # (E_in, Dh) for the current head
        b = refs[2 * j + 1][...]            # (1, Dh)
        o_ref = refs[2 * nproj + j]         # (tm, Dh)
        acc = jnp.dot(x, w, preferred_element_type=jnp.float32)
        o_ref[...] = (acc + b.astype(jnp.float32)).astype(o_ref.dtype)


def multi_head_proj(x, weights, biases, nhead):
    """x: (M, E_in); weights[j]: (H, E_in, Dh); biases[j]: (H, 1, Dh).
    Returns [ (H, M, Dh) ] * nproj — already head-split (no XLA transposes)."""
    M, E_in = x.shape
    nproj = len(weights)
    Dh = weights[0].shape[2]
    tm = _row_tile(M)
    grid = (pl.cdiv(M, tm), nhead)

    in_specs = [pl.BlockSpec((tm, E_in), lambda i, h: (i, 0))]
    args = [x]
    for w, b in zip(weights, biases):
        in_specs.append(pl.BlockSpec((pl.Squeezed(), E_in, Dh),
                                     lambda i, h: (h, 0, 0)))
        in_specs.append(pl.BlockSpec((pl.Squeezed(), 1, Dh),
                                     lambda i, h: (h, 0, 0)))
        args += [w, b]

    out_shape = tuple(jax.ShapeDtypeStruct((nhead, M, Dh), x.dtype)
                      for _ in range(nproj))
    out_specs = tuple(pl.BlockSpec((pl.Squeezed(), tm, Dh),
                                   lambda i, h: (h, i, 0))
                      for _ in range(nproj))

    outs = pl.pallas_call(
        functools.partial(_head_proj_kernel, nproj=nproj),
        out_shape=out_shape,
        grid_spec=pltpu.PrefetchScalarGridSpec(
            num_scalar_prefetch=0, grid=grid,
            in_specs=in_specs, out_specs=out_specs),
        compiler_params=_cparams(("parallel", "arbitrary")),
    )(*args)
    if nproj == 1 and not isinstance(outs, (list, tuple)):
        return [outs]
    return list(outs)


# ---------------------------------------------------------------------------
# Attention per (batch, head).  Cross-attention variant also accumulates the
# head-averaged probabilities in-kernel (probs output is an accumulator over h).
# ---------------------------------------------------------------------------
def _softmax_attend(q_ref, k_ref, v_ref, scale, exact_div):
    q = q_ref[...].astype(jnp.float32) * scale                      # (L, Dh)
    k = k_ref[...].astype(jnp.float32)                              # (S, Dh)
    s = jax.lax.dot_general(q, k, (((1,), (1,)), ((), ())),
                            preferred_element_type=jnp.float32)     # (L, S)
    s = s - jnp.max(s, axis=-1, keepdims=True)
    e = jnp.exp(s)
    denom = jnp.sum(e, axis=-1, keepdims=True)
    if exact_div:
        p = e / denom
    else:
        p = e * pl.reciprocal(denom, approx=True)    # EUP slot, frees VALU
    o = jnp.dot(p.astype(v_ref.dtype), v_ref[...],
                preferred_element_type=jnp.float32)                 # (L, Dh)
    return p, o


def _attn_probs_kernel(q_ref, k_ref, v_ref, o_ref, p_ref, *, scale, inv_nhead):
    h = pl.program_id(1)
    p, o = _softmax_attend(q_ref, k_ref, v_ref, scale, exact_div=True)
    o_ref[...] = o.astype(o_ref.dtype)

    @pl.when(h == 0)
    def _():
        p_ref[...] = jnp.zeros_like(p_ref)

    # head-averaged attention weights accumulated in VMEM (no per-head HBM probs)
    p_ref[...] += (p * inv_nhead).astype(p_ref.dtype)


def _attn_kernel(q_ref, k_ref, v_ref, o_ref, *, scale):
    _, o = _softmax_attend(q_ref, k_ref, v_ref, scale, exact_div=False)
    o_ref[...] = o.astype(o_ref.dtype)


def attention(q, k, v, nhead, batch, return_probs):
    """q: (H, B*L, Dh), k/v: (H, B*S, Dh), head-split & batch-major.
    Returns ctx (H, B*L, Dh) and optionally head-averaged probs (B, L, S)."""
    H, MQ, Dh = q.shape
    L = MQ // batch
    S = k.shape[1] // batch
    scale = 1.0 / math.sqrt(Dh)

    q4 = q.reshape(H, batch, L, Dh)       # free reshapes (contiguous)
    k4 = k.reshape(H, batch, S, Dh)
    v4 = v.reshape(H, batch, S, Dh)

    q_spec = pl.BlockSpec((pl.Squeezed(), pl.Squeezed(), L, Dh),
                          lambda b, h: (h, b, 0, 0))
    kv_spec = pl.BlockSpec((pl.Squeezed(), pl.Squeezed(), S, Dh),
                           lambda b, h: (h, b, 0, 0))
    o_spec = pl.BlockSpec((pl.Squeezed(), pl.Squeezed(), L, Dh),
                          lambda b, h: (h, b, 0, 0))
    ctx_shape = jax.ShapeDtypeStruct((H, batch, L, Dh), q.dtype)

    # TODO(synk): flash-style S-tiling (online softmax) for long sequences.
    if return_probs:
        kernel = functools.partial(_attn_probs_kernel, scale=scale,
                                   inv_nhead=1.0 / nhead)
        out_shape = (ctx_shape, jax.ShapeDtypeStruct((batch, L, S), jnp.float32))
        out_specs = (o_spec,
                     pl.BlockSpec((pl.Squeezed(), L, S), lambda b, h: (b, 0, 0)))
        sem = ("parallel", "arbitrary")   # probs accumulate over trailing h axis
    else:
        kernel = functools.partial(_attn_kernel, scale=scale)
        out_shape = ctx_shape
        out_specs = o_spec
        sem = ("parallel", "parallel")

    res = pl.pallas_call(
        kernel,
        out_shape=out_shape,
        grid_spec=pltpu.PrefetchScalarGridSpec(
            num_scalar_prefetch=0, grid=(batch, nhead),
            in_specs=[q_spec, kv_spec, kv_spec], out_specs=out_specs),
        compiler_params=_cparams(sem),
    )(q4, k4, v4)

    if return_probs:
        ctx, probs = res
        return ctx.reshape(H, MQ, Dh), probs
    return res.reshape(H, MQ, Dh), None


# ---------------------------------------------------------------------------
# Fused attention epilogue:  LayerNorm(residual + sum_h ctx_h @ Wo_h + bo)
# ---------------------------------------------------------------------------
def _outproj_add_ln_kernel(ctx_ref, wo_ref, res_ref, bo_ref, g_ref, b_ref,
                           o_ref, acc_ref, *, eps):
    h = pl.program_id(1)

    @pl.when(h == 0)
    def _():
        acc_ref[...] = jnp.zeros_like(acc_ref)

    acc_ref[...] += jnp.dot(ctx_ref[...], wo_ref[...],
                            preferred_element_type=jnp.float32)

    @pl.when(h == pl.num_programs(1) - 1)
    def _():
        x = (acc_ref[...] + bo_ref[...].astype(jnp.float32)
             + res_ref[...].astype(jnp.float32))
        mu = jnp.mean(x, axis=-1, keepdims=True)
        xc = x - mu
        var = jnp.mean(xc * xc, axis=-1, keepdims=True)
        y = xc * jax.lax.rsqrt(var + eps)
        y = y * g_ref[...].astype(jnp.float32) + b_ref[...].astype(jnp.float32)
        o_ref[...] = y.astype(o_ref.dtype)


def out_proj_add_layernorm(ctx, wo, bo, residual, gamma, beta, eps):
    """ctx: (H, M, Dh); wo: (H, Dh, E); residual: (M, E) -> (M, E)."""
    H, M, Dh = ctx.shape
    E = wo.shape[2]
    tm = _row_tile(M)
    return pl.pallas_call(
        functools.partial(_outproj_add_ln_kernel, eps=eps),
        out_shape=jax.ShapeDtypeStruct((M, E), residual.dtype),
        grid_spec=pltpu.PrefetchScalarGridSpec(
            num_scalar_prefetch=0, grid=(pl.cdiv(M, tm), H),
            in_specs=[
                pl.BlockSpec((pl.Squeezed(), tm, Dh), lambda i, h: (h, i, 0)),
                pl.BlockSpec((pl.Squeezed(), Dh, E), lambda i, h: (h, 0, 0)),
                pl.BlockSpec((tm, E), lambda i, h: (i, 0)),     # residual
                pl.BlockSpec((1, E), lambda i, h: (0, 0)),      # bo
                pl.BlockSpec((1, E), lambda i, h: (0, 0)),      # gamma
                pl.BlockSpec((1, E), lambda i, h: (0, 0)),      # beta
            ],
            out_specs=pl.BlockSpec((tm, E), lambda i, h: (i, 0)),
            scratch_shapes=[pltpu.VMEM((tm, E), jnp.float32)]),
        compiler_params=_cparams(("parallel", "arbitrary")),
    )(ctx, wo, residual, bo.reshape(1, E), gamma.reshape(1, E), beta.reshape(1, E))


# ---------------------------------------------------------------------------
# Fused FFN block:  LayerNorm(x + linear2(relu(linear1(x))))  with dff tiling
# ---------------------------------------------------------------------------
def _ffn_add_ln_kernel(x_ref, w1_ref, b1_ref, w2_ref, b2_ref, g_ref, b_ref,
                       o_ref, acc_ref, *, eps):
    f = pl.program_id(1)

    @pl.when(f == 0)
    def _():
        acc_ref[...] = jnp.zeros_like(acc_ref)

    x = x_ref[...]
    h = jnp.dot(x, w1_ref[...], preferred_element_type=jnp.float32)
    h = jnp.maximum(h + b1_ref[...].astype(jnp.float32), 0.0)       # ReLU
    acc_ref[...] += jnp.dot(h.astype(w2_ref.dtype), w2_ref[...],
                            preferred_element_type=jnp.float32)

    @pl.when(f == pl.num_programs(1) - 1)
    def _():
        y = (acc_ref[...] + b2_ref[...].astype(jnp.float32)
             + x_ref[...].astype(jnp.float32))                      # residual
        mu = jnp.mean(y, axis=-1, keepdims=True)
        yc = y - mu
        var = jnp.mean(yc * yc, axis=-1, keepdims=True)
        out = yc * jax.lax.rsqrt(var + eps)
        out = out * g_ref[...].astype(jnp.float32) + b_ref[...].astype(jnp.float32)
        o_ref[...] = out.astype(o_ref.dtype)


def ffn_add_layernorm(x, w1, b1, w2, b2, gamma, beta, eps):
    M, E = x.shape
    F = w1.shape[1]
    tm = _row_tile(M)
    tf = _col_tile(F)
    return pl.pallas_call(
        functools.partial(_ffn_add_ln_kernel, eps=eps),
        out_shape=jax.ShapeDtypeStruct((M, E), x.dtype),
        grid_spec=pltpu.PrefetchScalarGridSpec(
            num_scalar_prefetch=0, grid=(pl.cdiv(M, tm), F // tf),
            in_specs=[
                pl.BlockSpec((tm, E), lambda i, f: (i, 0)),
                pl.BlockSpec((E, tf), lambda i, f: (0, f)),
                pl.BlockSpec((1, tf), lambda i, f: (0, f)),
                pl.BlockSpec((tf, E), lambda i, f: (f, 0)),
                pl.BlockSpec((1, E), lambda i, f: (0, 0)),
                pl.BlockSpec((1, E), lambda i, f: (0, 0)),
                pl.BlockSpec((1, E), lambda i, f: (0, 0)),
            ],
            out_specs=pl.BlockSpec((tm, E), lambda i, f: (i, 0)),
            scratch_shapes=[pltpu.VMEM((tm, E), jnp.float32)]),
        compiler_params=_cparams(("parallel", "arbitrary")),
    )(x, w1, b1.reshape(1, F), w2, b2.reshape(1, E),
      gamma.reshape(1, E), beta.reshape(1, E))


# ---------------------------------------------------------------------------
# TransformerDecoderLayer forward (norm_first=False, short_cut=True)
# ---------------------------------------------------------------------------
def transformer_decoder_layer(tgt, memory, params, nhead, eps=1e-5):
    L, B, E = tgt.shape
    S = memory.shape[0]

    # Single batch-first layout change at entry/exit; everything in between is
    # batch-major folded rows + head-split tensors (no per-head XLA transposes).
    x0 = jnp.transpose(tgt, (1, 0, 2)).reshape(B * L, E)
    m0 = jnp.transpose(memory, (1, 0, 2)).reshape(B * S, memory.shape[-1])

    # --- cross-attention block (returns head-averaged attention weights) -----
    pc = params["cross"]
    (q_c,) = multi_head_proj(x0, [pc["wq"]], [pc["bq"]], nhead)
    k_c, v_c = multi_head_proj(m0, [pc["wk"], pc["wv"]], [pc["bk"], pc["bv"]], nhead)
    ctx_c, attn_w = attention(q_c, k_c, v_c, nhead, B, return_probs=True)
    x1 = out_proj_add_layernorm(ctx_c, pc["wo"], pc["bo"], x0,
                                params["ln1"]["g"], params["ln1"]["b"], eps)

    # --- self-attention block (fused q/k/v projection, no weights returned) ---
    ps = params["self"]
    q_s, k_s, v_s = multi_head_proj(x1, [ps["wq"], ps["wk"], ps["wv"]],
                                    [ps["bq"], ps["bk"], ps["bv"]], nhead)
    ctx_s, _ = attention(q_s, k_s, v_s, nhead, B, return_probs=False)
    x2 = out_proj_add_layernorm(ctx_s, ps["wo"], ps["bo"], x1,
                                params["ln2"]["g"], params["ln2"]["b"], eps)

    # --- feed-forward block (residual + LayerNorm3 fused inside the kernel) ---
    pf = params["ffn"]
    x3 = ffn_add_layernorm(x2, pf["w1"], pf["b1"], pf["w2"], pf["b2"],
                           params["ln3"]["g"], params["ln3"]["b"], eps)

    out = jnp.transpose(x3.reshape(B, L, E), (1, 0, 2))
    return out, attn_w


# ---------------------------------------------------------------------------
# Parameters: attention projections stored head-split so the Pallas path needs
# no weight reshuffling:  w*: (H, in_dim, Dh), b*: (H, 1, Dh), wo: (H, Dh, E).
# ---------------------------------------------------------------------------
def init_params(key, d_model, nhead, kdim, vdim, dff):
    keys = iter(jax.random.split(key, 32))
    dh = d_model // nhead

    def w(shape, scale=0.08):
        return scale * jax.random.normal(next(keys), shape, jnp.float32)

    def attn_params(kd, vd):
        return {
            "wq": w((nhead, d_model, dh)), "bq": w((nhead, 1, dh)),
            "wk": w((nhead, kd, dh)),      "bk": w((nhead, 1, dh)),
            "wv": w((nhead, vd, dh)),      "bv": w((nhead, 1, dh)),
            "wo": w((nhead, dh, d_model)), "bo": w((d_model,)),
        }

    def ln_params():
        return {"g": 1.0 + w((d_model,), 0.05), "b": w((d_model,), 0.05)}

    return {
        "cross": attn_params(kdim, vdim),
        "self": attn_params(d_model, d_model),
        "ln1": ln_params(), "ln2": ln_params(), "ln3": ln_params(),
        "ffn": {"w1": w((d_model, dff)), "b1": w((dff,)),
                "w2": w((dff, d_model)), "b2": w((d_model,))},
    }


# ---------------------------------------------------------------------------
# Pure-JAX reference of the PyTorch forward (eval mode, no masks)
# ---------------------------------------------------------------------------
def _std_attn_params(p):
    H, _, Dh = p["wq"].shape

    def cat_w(w):   # (H, in, Dh) -> (in, H*Dh)
        return w.transpose(1, 0, 2).reshape(w.shape[1], H * Dh)

    def cat_b(b):   # (H, 1, Dh) -> (H*Dh,)
        return b.reshape(H * Dh)

    return {"wq": cat_w(p["wq"]), "bq": cat_b(p["bq"]),
            "wk": cat_w(p["wk"]), "bk": cat_b(p["bk"]),
            "wv": cat_w(p["wv"]), "bv": cat_b(p["bv"]),
            "wo": p["wo"].reshape(H * Dh, -1), "bo": p["bo"]}


def _ref_layer(tgt, memory, params, nhead, eps=1e-5):
    def mha(q_in, k_in, v_in, p):
        L_, B_, E_ = q_in.shape
        S_ = k_in.shape[0]
        Dh_ = E_ // nhead
        q = q_in @ p["wq"] + p["bq"]
        k = k_in @ p["wk"] + p["bk"]
        v = v_in @ p["wv"] + p["bv"]
        q = q.reshape(L_, B_, nhead, Dh_).transpose(1, 2, 0, 3)
        k = k.reshape(S_, B_, nhead, Dh_).transpose(1, 2, 0, 3)
        v = v.reshape(S_, B_, nhead, Dh_).transpose(1, 2, 0, 3)
        s = jnp.einsum("bhld,bhsd->bhls", q, k) / jnp.sqrt(jnp.float32(Dh_))
        pw = jax.nn.softmax(s, axis=-1)
        ctx = jnp.einsum("bhls,bhsd->bhld", pw, v)
        ctx = ctx.transpose(2, 0, 1, 3).reshape(L_, B_, E_)
        return ctx @ p["wo"] + p["bo"], pw.mean(axis=1)

    def ln(x, g, b):
        mu = x.mean(-1, keepdims=True)
        var = ((x - mu) ** 2).mean(-1, keepdims=True)
        return (x - mu) * jax.lax.rsqrt(var + eps) * g + b

    cross_p = _std_attn_params(params["cross"])
    self_p = _std_attn_params(params["self"])
    cross, attn_w = mha(tgt, memory, memory, cross_p)
    x = ln(tgt + cross, params["ln1"]["g"], params["ln1"]["b"])
    sa, _ = mha(x, x, x, self_p)
    x = ln(x + sa, params["ln2"]["g"], params["ln2"]["b"])
    h = jnp.maximum(x @ params["ffn"]["w1"] + params["ffn"]["b1"], 0.0)
    ff = h @ params["ffn"]["w2"] + params["ffn"]["b2"]
    x = ln(x + ff, params["ln3"]["g"], params["ln3"]["b"])
    return x, attn_w


if __name__ == "__main__":
    # batch_first=False: tgt (L, B, d_model), memory (S, B, kdim). kdim == vdim
    # (the same `memory` tensor feeds key and value), chosen != d_model to
    # exercise the separate cross-attention projections.
    d_model, nhead, kdim, vdim, dff = 32, 4, 48, 48, 64
    L, S, B = 8, 12, 2

    key = jax.random.PRNGKey(0)
    k_t, k_m, k_p = jax.random.split(key, 3)
    tgt = jax.random.normal(k_t, (L, B, d_model), jnp.float32)
    memory = jax.random.normal(k_m, (S, B, kdim), jnp.float32)
    params = init_params(k_p, d_model, nhead, kdim, vdim, dff)

    out, attn_w = transformer_decoder_layer(tgt, memory, params, nhead)
    out = jax.block_until_ready(out)
    attn_w = jax.block_until_ready(attn_w)

    ref_out, ref_w = _ref_layer(tgt, memory, params, nhead)
    assert out.shape == (L, B, d_model)
    assert attn_w.shape == (B, L, S)
    # Self-attention path uses pl.reciprocal(approx=True) -> slightly looser tol.
    assert jnp.allclose(out, ref_out, atol=1e-2, rtol=1e-2)
    # Cross-attention weights use exact division -> tight tolerance.
    assert jnp.allclose(attn_w, ref_w, atol=1e-3, rtol=1e-3)

    print("KERNEL_OK")
</pallas_src>

<mosaic_0001>
module attributes {stable_mosaic.version = 11 : i64} {
  func.func @_head_proj_kernel(%arg0: i32, %arg1: i32, %arg2: memref<16x32xf32, #tpu.memory_space<vmem>>, %arg3: memref<1x32x8xf32, #tpu.memory_space<vmem>>, %arg4: memref<1x1x8xf32, #tpu.memory_space<vmem>>, %arg5: memref<1x16x8xf32, #tpu.memory_space<vmem>>) attributes {dimension_semantics = [#tpu.dimension_semantics<parallel>, #tpu.dimension_semantics<arbitrary>], iteration_bounds = array<i64: 1, 4>, scalar_prefetch = 0 : i64, scratch_operands = 0 : i64, tpu.core_type = #tpu.core_type<tc>, window_params = [{transform_indices = @transform_0, window_bounds = array<i64: 16, 32>}, {transform_indices = @transform_1, window_bounds = array<i64: 1, 32, 8>}, {transform_indices = @transform_2, window_bounds = array<i64: 1, 1, 8>}, {transform_indices = @transform_3, window_bounds = array<i64: 1, 16, 8>}]} {
    %c0 = arith.constant 0 : index
    %c0_0 = arith.constant 0 : index
    %0 = vector.load %arg2[%c0, %c0_0] : memref<16x32xf32, #tpu.memory_space<vmem>>, vector<16x32xf32>
    %c0_1 = arith.constant 0 : index
    %c0_2 = arith.constant 0 : index
    %c0_3 = arith.constant 0 : index
    %1 = vector.load %arg3[%c0_1, %c0_2, %c0_3] : memref<1x32x8xf32, #tpu.memory_space<vmem>>, vector<1x32x8xf32>
    %2 = vector.shape_cast %1 : vector<1x32x8xf32> to vector<32x8xf32>
    %c0_4 = arith.constant 0 : index
    %c0_5 = arith.constant 0 : index
    %c0_6 = arith.constant 0 : index
    %3 = vector.load %arg4[%c0_4, %c0_5, %c0_6] : memref<1x1x8xf32, #tpu.memory_space<vmem>>, vector<1x1x8xf32>
    %4 = vector.shape_cast %3 : vector<1x1x8xf32> to vector<1x8xf32>
    %cst = arith.constant dense<0.000000e+00> : vector<16x8xf32>
    %5 = tpu.matmul %0, %2, %cst {dimension_numbers = #tpu.dot_dimension_numbers<[1], [0], [0], [1], [0, 0, 1, 1], [], []>} : vector<16x32xf32>, vector<32x8xf32>, vector<16x8xf32> -> vector<16x8xf32>
    %6 = vector.broadcast %4 : vector<1x8xf32> to vector<16x8xf32>
    %7 = arith.addf %5, %6 : vector<16x8xf32>
    %c0_7 = arith.constant 0 : index
    %c0_8 = arith.constant 0 : index
    %c0_9 = arith.constant 0 : index
    %8 = vector.load %arg5[%c0_7, %c0_8, %c0_9] : memref<1x16x8xf32, #tpu.memory_space<vmem>>, vector<1x16x8xf32>
    %9 = vector.shape_cast %8 : vector<1x16x8xf32> to vector<16x8xf32>
    %10 = vector.shape_cast %7 : vector<16x8xf32> to vector<1x16x8xf32>
    tpu.vector_store %arg5[%c0_7, %c0_8, %c0_9], %10 {strides = array<i32>} : memref<1x16x8xf32, #tpu.memory_space<vmem>>, vector<1x16x8xf32>,
    return
  }
  func.func @transform_0(%arg0: i32, %arg1: i32) -> (i32, i32) {
    %c0_i32 = arith.constant 0 : i32
    %c0_i32_0 = arith.constant 0 : i32
    return %arg0, %c0_i32 : i32, i32
  }
  func.func @transform_1(%arg0: i32, %arg1: i32) -> (i32, i32, i32) {
    %c0_i32 = arith.constant 0 : i32
    %c0_i32_0 = arith.constant 0 : i32
    %c0_i32_1 = arith.constant 0 : i32
    return %arg1, %c0_i32, %c0_i32_0 : i32, i32, i32
  }
  func.func @transform_2(%arg0: i32, %arg1: i32) -> (i32, i32, i32) {
    %c0_i32 = arith.constant 0 : i32
    %c0_i32_0 = arith.constant 0 : i32
    %c0_i32_1 = arith.constant 0 : i32
    return %arg1, %c0_i32, %c0_i32_0 : i32, i32, i32
  }
  func.func @transform_3(%arg0: i32, %arg1: i32) -> (i32, i32, i32) {
    %c0_i32 = arith.constant 0 : i32
    %c0_i32_0 = arith.constant 0 : i32
    return %arg1, %arg0, %c0_i32 : i32, i32, i32
  }
}

</mosaic_0001>

<llo_original>
// kernel: tpu_custom_call.1
$region0: #{tpu_custom_call.1}
  #allocation0 [shape = 'u32[]', space=smem, size = 0x4, offset = 0x4, fixed_abs, tag = 'smem constant byte address 0x4 - core index']
  #allocation1 [shape = 'u32[144,128]{1,0:T(1,128)}', space=vmem, size = 0x12000, scoped, tag = 'internal scratch']
  %s0 = inlined_call_operand.vmem [shape: f32[16,32], index: 0, kind: input, shape index: {}]
  %s1 = inlined_call_operand.vmem [shape: f32[4,32,8], index: 1, kind: input, shape index: {}]
  %s2 = inlined_call_operand.vmem [shape: f32[4,1,8], index: 2, kind: input, shape index: {}]
  %s3 = inlined_call_operand.vmem [shape: f32[4,16,8], index: 3, kind: output, shape index: {}]
  %s4 = sld [smem:[#allocation0]]
  $region45: #{tpu_custom_call.1} parent=0
    _
  %s6 = ssub.s32 1, %s4
  %s7 = scalar_select 0, %s6, %s4
  loop: start=0, step=1, limit=6
  $region2: #{tpu_custom_call.1} parent=0 // loop_pre_header
    _
  $region3: #{tpu_custom_call.1} parent=0 // loop_header
    %s9 = sphi 0, %s13
    %p10 = scmp.ge.s32.totalorder %s9, 6
    %s16 = sphi 0, %s28
    %s17 = sphi 0, %s24
    %s18 = sphi 0, %s16
    %s19 = sphi 0, %s17
    %s20 = sphi 0, %s18
    %s21 = sphi 0, %s19
    %s31 = sphi 0, %s33
    %s34 = sphi 0, %s31
    %s35 = sphi 0, %s34
    %s51 = sphi 0, %s35
    %s57 = sphi 0, %s59
    %s60 = sphi 0, %s57
    %s61 = sphi 0, %s60
    %s77 = sphi 0, %s61
    %s83 = sphi 0, %s85
    %s86 = sphi 0, %s83
    %s87 = sphi 0, %s86
    %s103 = sphi 0, %s87
    %s111 = sphi 0, %s113
    %s114 = sphi 0, %s111
    %s115 = sphi 0, %s114
    %s131 = sphi 0, %s115
  $region4: #{tpu_custom_call.1} parent=0 // loop_header_branch
    %12 = sbr.rel (%p10) target = $region8
  $region5: #{tpu_custom_call.1} parent=0 // loop_body
    %s14 = ssub.s32 %s9, 1
    %s15 = ssub.s32 %s9, 2
    %s22 = sadd.s32 1, %s17
    %p23 = scmp.ge.s32.totalorder %s22, 4
    %s24 = scalar_select %p23, 0, %s22
    %s25 = sadd.s32 1, %s16
    %s26 = scalar_select %p23, %s25, %s16
    %p27 = scmp.ge.s32.totalorder %s26, 1
    %s28 = scalar_select %p27, 0, %s26
    %s29 = ssub.s32 %s16, %s28
    %p30 = scmp.eq.s32.totalorder %s29, 0
    %s32 = sadd.s32 %s31, 1
    %s33 = scalar_select %p30, %s31, %s32
    %p36 = pneg %p30
    %p37 = scmp.eq.s32.totalorder %s9, 3
    %p38 = por %p36, %p37
    %p39 = scmp.ne.s32.totalorder %s31, %s34
    %p40 = scmp.eq.s32.totalorder %s9, 0
    %p41 = por %p39, %p40
    %p42 = scmp.ne.s32.totalorder %s31, %s34
    %p43 = scmp.eq.s32.totalorder %s14, 3
    %p44 = por %p42, %p43
    %p45 = scmp.ne.s32.totalorder %s34, %s35
    %p46 = scmp.eq.s32.totalorder %s14, 0
    %p47 = por %p45, %p46
    %p48 = scmp.ne.s32.totalorder %s34, %s35
    %p49 = scmp.eq.s32.totalorder %s15, 3
    %p50 = por %p48, %p49
    %p52 = scmp.ne.s32.totalorder %s35, %s51
    %p53 = scmp.eq.s32.totalorder %s15, 0
    %p54 = por %p52, %p53
    %s55 = ssub.s32 %s17, %s24
    %p56 = scmp.eq.s32.totalorder %s55, 0
    %s58 = sadd.s32 %s57, 1
    %s59 = scalar_select %p56, %s57, %s58
    %p62 = pneg %p56
    %p63 = scmp.eq.s32.totalorder %s9, 3
    %p64 = por %p62, %p63
    %p65 = scmp.ne.s32.totalorder %s57, %s60
    %p66 = scmp.eq.s32.totalorder %s9, 0
    %p67 = por %p65, %p66
    %p68 = scmp.ne.s32.totalorder %s57, %s60
    %p69 = scmp.eq.s32.totalorder %s14, 3
    %p70 = por %p68, %p69
    %p71 = scmp.ne.s32.totalorder %s60, %s61
    %p72 = scmp.eq.s32.totalorder %s14, 0
    %p73 = por %p71, %p72
    %p74 = scmp.ne.s32.totalorder %s60, %s61
    %p75 = scmp.eq.s32.totalorder %s15, 3
    %p76 = por %p74, %p75
    %p78 = scmp.ne.s32.totalorder %s61, %s77
    %p79 = scmp.eq.s32.totalorder %s15, 0
    %p80 = por %p78, %p79
    %s81 = ssub.s32 %s17, %s24
    %p82 = scmp.eq.s32.totalorder %s81, 0
    %s84 = sadd.s32 %s83, 1
    %s85 = scalar_select %p82, %s83, %s84
    %p88 = pneg %p82
    %p89 = scmp.eq.s32.totalorder %s9, 3
    %p90 = por %p88, %p89
    %p91 = scmp.ne.s32.totalorder %s83, %s86
    %p92 = scmp.eq.s32.totalorder %s9, 0
    %p93 = por %p91, %p92
    %p94 = scmp.ne.s32.totalorder %s83, %s86
    %p95 = scmp.eq.s32.totalorder %s14, 3
    %p96 = por %p94, %p95
    %p97 = scmp.ne.s32.totalorder %s86, %s87
    %p98 = scmp.eq.s32.totalorder %s14, 0
    %p99 = por %p97, %p98
    %p100 = scmp.ne.s32.totalorder %s86, %s87
    %p101 = scmp.eq.s32.totalorder %s15, 3
    %p102 = por %p100, %p101
    %p104 = scmp.ne.s32.totalorder %s87, %s103
    %p105 = scmp.eq.s32.totalorder %s15, 0
    %p106 = por %p104, %p105
    %s107 = ssub.s32 %s17, %s24
    %s108 = ssub.s32 %s16, %s28
    %s109 = sor.u32 %s107, %s108
    %p110 = scmp.eq.s32.totalorder %s109, 0
    %s112 = sadd.s32 %s111, 1
    %s113 = scalar_select %p110, %s111, %s112
    %p116 = pneg %p110
    %p117 = scmp.eq.s32.totalorder %s9, 3
    %p118 = por %p116, %p117
    %p119 = scmp.ne.s32.totalorder %s111, %s114
    %p120 = scmp.eq.s32.totalorder %s9, 0
    %p121 = por %p119, %p120
    %p122 = scmp.ne.s32.totalorder %s111, %s114
    %p123 = scmp.eq.s32.totalorder %s14, 3
    %p124 = por %p122, %p123
    %p125 = scmp.ne.s32.totalorder %s114, %s115
    %p126 = scmp.eq.s32.totalorder %s14, 0
    %p127 = por %p125, %p126
    %p128 = scmp.ne.s32.totalorder %s114, %s115
    %p129 = scmp.eq.s32.totalorder %s15, 3
    %p130 = por %p128, %p129
    %p132 = scmp.ne.s32.totalorder %s115, %s131
    %p133 = scmp.eq.s32.totalorder %s15, 0
    %p134 = por %p132, %p133
    %p135 = scmp.le.s32.totalorder 1, %s9
    %p136 = scmp.lt.s32.totalorder %s9, 5
    %p137 = pnand %p135, %p136
    %p138 = pneg %p137
    // Predicated region
    $region9: #{tpu_custom_call.1} parent=5 // pred_check
      _
    $region10: #{tpu_custom_call.1} parent=5 // pred_check_branch
      %140 = sbr.rel (%p137) target = $region12
    $region11: #{tpu_custom_call.1} parent=5 // pred_region
      %s141 = ssub.s32 %s9, 1
      // Predicated region
      $region13: #{tpu_custom_call.1} parent=11 // pred_check
        %p142 = pneg %p47
      $region14: #{tpu_custom_call.1} parent=11 // pred_check_branch
        %144 = sbr.rel (%p142) target = $region16
      $region15: #{tpu_custom_call.1} parent=11 // pred_region
        %s145 = smul.u32 2, %s18
        %p146 = scmp.lt.s32.totalorder %s145, 1
        %s147 = scalar_select %p146, %s145, 1
        %s148 = smul.addr %s147, 8
        %s149 = scalar_lea.vmem %s0, %s148
        %s150 = smul.u32 2, %s18
      $region16: #{tpu_custom_call.1} parent=11 // pred_fallthru
        _
    $region12: #{tpu_custom_call.1} parent=5 // pred_fallthru
      _
    %p151 = scmp.lt.s32.totalorder %s9, 4
    // Predicated region
    $region17: #{tpu_custom_call.1} parent=5 // pred_check
      %p152 = pneg %p151
    $region18: #{tpu_custom_call.1} parent=5 // pred_check_branch
      %154 = sbr.rel (%p152) target = $region20
    $region19: #{tpu_custom_call.1} parent=5 // pred_region
      // Predicated region
      $region21: #{tpu_custom_call.1} parent=19 // pred_check
        %p155 = pneg %p67
      $region22: #{tpu_custom_call.1} parent=19 // pred_check_branch
        %157 = sbr.rel (%p155) target = $region24
      $region23: #{tpu_custom_call.1} parent=19 // pred_region
        %p158 = scmp.lt.s32.totalorder %s17, 3
        %s159 = scalar_select %p158, %s17, 3
        %s160 = smul.addr %s159, 4
        %s161 = smul.addr %s160, 8
        %s162 = scalar_lea.vmem %s1, %s161
      $region24: #{tpu_custom_call.1} parent=19 // pred_fallthru
        _
      // Predicated region
      $region25: #{tpu_custom_call.1} parent=19 // pred_check
        %p163 = pneg %p93
      $region26: #{tpu_custom_call.1} parent=19 // pred_check_branch
        %165 = sbr.rel (%p163) target = $region28
      $region27: #{tpu_custom_call.1} parent=19 // pred_region
        %p166 = scmp.lt.s32.totalorder %s17, 3
        %s167 = scalar_select %p166, %s17, 3
        %s168 = scalar_lea.vmem %s2, %s167
      $region28: #{tpu_custom_call.1} parent=19 // pred_fallthru
        _
    $region20: #{tpu_custom_call.1} parent=5 // pred_fallthru
      _
    %p169 = scmp.le.s32.totalorder 1, %s9
    %p170 = scmp.lt.s32.totalorder %s9, 5
    %p171 = pnand %p169, %p170
    %p172 = pneg %p171
    // Predicated region
    $region29: #{tpu_custom_call.1} parent=5 // pred_check
      _
    $region30: #{tpu_custom_call.1} parent=5 // pred_check_branch
      %174 = sbr.rel (%p171) target = $region32
    $region31: #{tpu_custom_call.1} parent=5 // pred_region
      %s175 = ssub.s32 %s9, 1
      %s176 = smul.u32 2, %s18
      %p177 = scmp.lt.s32.totalorder %s176, 1
      %s178 = scalar_select %p177, %s176, 1
      %s179 = smul.addr %s178, 8
      %s180 = scalar_lea.vmem %s0, %s179
      %p181 = pneg %p47
      %p182 = pneg %p44
      %p183 = scmp.lt.s32.totalorder %s19, 3
      %s184 = scalar_select %p183, %s19, 3
      %s185 = smul.addr %s184, 4
      %s186 = smul.addr %s185, 8
      %s187 = scalar_lea.vmem %s1, %s186
      %p188 = pneg %p73
      %p189 = pneg %p70
      %p190 = scmp.lt.s32.totalorder %s19, 3
      %s191 = scalar_select %p190, %s19, 3
      %s192 = scalar_lea.vmem %s2, %s191
      %p193 = pneg %p99
      %p194 = pneg %p96
      %p195 = pneg %p127
      %p196 = pneg %p124
      %s197 = smul.u32 2, %s18
      %p198 = scmp.lt.s32.totalorder %s19, 3
      %s199 = scalar_select %p198, %s19, 3
      %p200 = scmp.lt.s32.totalorder %s197, 1
      %s201 = scalar_select %p200, %s197, 1
      %s202 = smul.addr %s199, 2
      %s203 = sadd.s32 %s201, %s202
      %s204 = smul.addr %s203, 8
      %s205 = scalar_lea.vmem %s3, %s204
      %s206 = smul.u32 2, %s18
      %p207 = scmp.lt.s32.totalorder %s206, 1
      %s208 = scalar_select %p207, %s206, 1
      %s209 = smul.addr %s208, 8
      %s210 = scalar_lea.vmem %s0, %s209
      %s211 = smul.u32 2, %s18
      %p212 = scmp.lt.s32.totalorder %s19, 3
      %s213 = scalar_select %p212, %s19, 3
      %s214 = smul.addr %s213, 4
      %s215 = smul.addr %s214, 8
      %s216 = scalar_lea.vmem %s1, %s215
      %p217 = scmp.lt.s32.totalorder %s19, 3
      %s218 = scalar_select %p217, %s19, 3
      %s219 = scalar_lea.vmem %s2, %s218
      %s220 = smul.u32 2, %s18
      %p221 = scmp.lt.s32.totalorder %s19, 3
      %s222 = scalar_select %p221, %s19, 3
      %p223 = scmp.lt.s32.totalorder %s220, 1
      %s224 = scalar_select %p223, %s220, 1
      %s225 = smul.addr %s222, 2
      %s226 = sadd.s32 %s224, %s225
      %s227 = smul.addr %s226, 8
      %s228 = scalar_lea.vmem %s3, %s227
      %s229 = smul.u32 2, %s18
      %v230 = vld [vmem:[%s210] sm:$0xff]
      %v231 = vld [vmem:[%s210 + $0x8] sm:$0xff]
      %v232 = vld [vmem:[%s216] sm:$0xff]
      %v233 = vld [vmem:[%s216 + $0x8] sm:$0xff]
      %v234 = vld [vmem:[%s216 + $0x10] sm:$0xff]
      %v235 = vld [vmem:[%s216 + $0x18] sm:$0xff]
      %v236 = vld [vmem:[%s219] sm:$0x1]
      %v238 = vlaneseq
      %v239 = vshrl.u32 %v238, 7
      %v240 = vsub.s32 0, %v239
      %v241 = vrot.slane %v236, %v240
      %vm243 = vcmask 261120
      %v245 = vsel %vm243, %v230, 0
      %v248 = vsel %vm243, %v231, 0
      %250 = vmatprep.subr.mxu0 0.0
      %251 = vmatpush1.msra.mxu0 0.0
      %252 = vmatprep.subr.mxu0 0.0
      %253 = vmatpush1.msra.mxu0 0.0
      %254 = vmatprep.subr.mxu0 0.0
      %255 = vmatpush1.msra.mxu0 0.0
      %256 = vmatprep.subr.mxu0 0.0
      %257 = vmatpush1.msra.mxu0 0.0
      %258 = vmatprep.subr.mxu0 0.0
      %259 = vmatpush1.msra.mxu0 0.0
      %260 = vmatprep.subr.mxu0 0.0
      %261 = vmatpush1.msra.mxu0 0.0
      %262 = vmatprep.subr.mxu0 0.0
      %263 = vmatpush1.msra.mxu0 0.0
      %264 = vmatprep.subr.mxu0 0.0
      %265 = vmatpush1.msra.mxu0 0.0
      %266 = vmatprep.subr.mxu0 0.0
      %267 = vmatpush1.msra.mxu0 0.0
      %268 = vmatprep.subr.mxu0 0.0
      %269 = vmatpush1.msra.mxu0 0.0
      %270 = vmatprep.subr.mxu0 0.0
      %271 = vmatpush1.msra.mxu0 0.0
      %272 = vmatprep.subr.mxu0 0.0
      %273 = vmatpush1.msra.mxu0 0.0
      %274 = vmatprep.subr.mxu0 0.0
      %275 = vmatpush1.msra.mxu0 %v235
      %276 = vmatprep.subr.mxu0 0.0
      %277 = vmatpush1.msra.mxu0 %v234
      %278 = vmatprep.subr.mxu0 0.0
      %279 = vmatpush1.msra.mxu0 %v233
      %280 = vmatprep.subr.mxu0 0.0
      %281 = vmatpush1.msra.mxu0 %v232
      %282 = vmatprep.subr.mxu0 0.0
      %283 = vmatpush2.msra.mxu0 0.0
      %284 = vmatprep.subr.mxu0 0.0
      %285 = vmatpush2.msra.mxu0 0.0
      %286 = vmatprep.subr.mxu0 0.0
      %287 = vmatpush2.msra.mxu0 0.0
      %288 = vmatprep.subr.mxu0 0.0
      %289 = vmatpush2.msra.mxu0 0.0
      %290 = vmatprep.subr.mxu0 0.0
      %291 = vmatpush2.msra.mxu0 0.0
      %292 = vmatprep.subr.mxu0 0.0
      %293 = vmatpush2.msra.mxu0 0.0
      %294 = vmatprep.subr.mxu0 0.0
      %295 = vmatpush2.msra.mxu0 0.0
      %296 = vmatprep.subr.mxu0 0.0
      %297 = vmatpush2.msra.mxu0 0.0
      %298 = vmatprep.subr.mxu0 0.0
      %299 = vmatpush2.msra.mxu0 0.0
      %300 = vmatprep.subr.mxu0 0.0
      %301 = vmatpush2.msra.mxu0 0.0
      %302 = vmatprep.subr.mxu0 0.0
      %303 = vmatpush2.msra.mxu0 0.0
      %304 = vmatprep.subr.mxu0 0.0
      %305 = vmatpush2.msra.mxu0 0.0
      %306 = vmatprep.subr.mxu0 0.0
      %307 = vmatpush2.msra.mxu0 0.0
      %308 = vmatprep.subr.mxu0 0.0
      %309 = vmatpush2.msra.mxu0 0.0
      %310 = vmatprep.subr.mxu0 0.0
      %311 = vmatpush2.msra.mxu0 0.0
      %312 = vmatprep.subr.mxu0 0.0
      %313 = vmatpush2.msra.mxu0 0.0
      %314 = vmatprep.mubr.f32.mxu0 0.0
      %315 = vmatmul.mubr.f32.gmra.mxu0 %v245
      %v316 = vpop.f32.mrf.mxu0
      %v317 = vadd.f32 %v241, %v316
      %v318 = vpop.f32.mrf.mxu0
      %319 = vmatprep.mubr.f32.mxu0 0.0
      %320 = vmatmul.mubr.f32.gmra.mxu0 %v248
      %v321 = vpop.f32.mrf.mxu0
      %v322 = vadd.f32 %v241, %v321
      %v323 = vpop.f32.mrf.mxu0
      %324 = vdwg.mxu0
      %vm325 = vcmask 64512
      %326 = vst.msk [vmem:[%s228] sm:$0xff] %vm325, %v317
      %327 = vst.msk [vmem:[%s228 + $0x8] sm:$0xff] %vm325, %v322
      %s328 = smul.u32 2, %s18
      %p329 = scmp.lt.s32.totalorder %s19, 3
      %s330 = scalar_select %p329, %s19, 3
      %p331 = scmp.lt.s32.totalorder %s328, 1
      %s332 = scalar_select %p331, %s328, 1
      %s333 = smul.addr %s330, 2
      %s334 = sadd.s32 %s332, %s333
      %s335 = smul.addr %s334, 8
      %s336 = scalar_lea.vmem %s3, %s335
      // Predicated region
      $region33: #{tpu_custom_call.1} parent=31 // pred_check
        %p337 = pneg %p124
      $region34: #{tpu_custom_call.1} parent=31 // pred_check_branch
        %339 = sbr.rel (%p337) target = $region36
      $region35: #{tpu_custom_call.1} parent=31 // pred_region
        %s340 = smul.u32 2, %s18
      $region36: #{tpu_custom_call.1} parent=31 // pred_fallthru
        _
    $region32: #{tpu_custom_call.1} parent=5 // pred_fallthru
      _
    %p341 = scmp.le.s32.totalorder 2, %s9
    // Predicated region
    $region37: #{tpu_custom_call.1} parent=5 // pred_check
      %p342 = pneg %p341
    $region38: #{tpu_custom_call.1} parent=5 // pred_check_branch
      %344 = sbr.rel (%p342) target = $region40
    $region39: #{tpu_custom_call.1} parent=5 // pred_region
      %s345 = ssub.s32 %s9, 2
      // Predicated region
      $region41: #{tpu_custom_call.1} parent=39 // pred_check
        %p346 = pneg %p130
      $region42: #{tpu_custom_call.1} parent=39 // pred_check_branch
        %348 = sbr.rel (%p346) target = $region44
      $region43: #{tpu_custom_call.1} parent=39 // pred_region
        %s349 = smul.u32 2, %s20
        %p350 = scmp.lt.s32.totalorder %s21, 3
        %s351 = scalar_select %p350, %s21, 3
        %p352 = scmp.lt.s32.totalorder %s349, 1
        %s353 = scalar_select %p352, %s349, 1
        %s354 = smul.addr %s351, 2
        %s355 = sadd.s32 %s353, %s354
        %s356 = smul.addr %s355, 8
        %s357 = scalar_lea.vmem %s3, %s356
      $region44: #{tpu_custom_call.1} parent=39 // pred_fallthru
        _
    $region40: #{tpu_custom_call.1} parent=5 // pred_fallthru
      _
  $region6: #{tpu_custom_call.1} parent=0 // loop_footer
    %s13 = sadd.s32 1, %s9
  $region7: #{tpu_custom_call.1} parent=0 // loop_footer_branch
    %8 = sbr.rel target = $region3
  $region8: #{tpu_custom_call.1} parent=0 // loop_exit
    _

</llo_original>
